<compile_context>
chip_gen: v7x
topology: tpu7x:2x2x1
jax: 0.10.0
libtpu: 0.0.40
codegen_flags: <defaults>
</compile_context>

<pallas_src>
import functools

import jax
import jax.numpy as jnp
from jax import lax
from jax.experimental import pallas as pl
from jax.experimental.pallas import tpu as pltpu


def _semantic_composite_kernel(
    x_ref,      # (1, L, D)   full-sequence x for this batch element (queries + keys/values)
    b_ref,      # (1, 1, L)   precomputed <x_j, w2>, f32
    w3_ref,     # (1, D)      elementwise attention weight w3
    wgx_ref,    # (D, 3D)     gate weights acting on x   rows, [Wz|Wr|Wf]
    wga_ref,    # (D, 3D)     gate weights acting on attn rows, [Wz|Wr|Wf]
    bg_ref,     # (1, 3D)     fused gate bias [bz|br|bf]
    out_ref,    # (1, TQ, D)
    *,
    mxu_dtype,  # None -> use input dtype on the MXU; else cast MXU operands (e.g. bf16)
):
    TQ = out_ref.shape[1]
    D = out_ref.shape[2]

    x_kv = x_ref[0]                                            # [L, D] input dtype
    q_start = pl.multiple_of(pl.program_id(1) * TQ, TQ)
    x_q = x_ref[0, pl.ds(q_start, TQ), :]                      # [TQ, D] slice of resident block

    mdt = x_kv.dtype if mxu_dtype is None else mxu_dtype
    x_kv_m = x_kv.astype(mdt)

    # Cross term: ((x_q * w3) @ x_kv^T). N-T contraction on the MXU (no transpose).
    xq_w3 = (x_q * w3_ref[...].astype(x_q.dtype)).astype(mdt)  # [TQ, D]
    cross = lax.dot_general(
        xq_w3, x_kv_m,
        dimension_numbers=(((1,), (1,)), ((), ())),
        preferred_element_type=jnp.float32)                    # [TQ, L] f32

    # a-term (<x_i, w1>) dropped: constant along softmax axis -> cancels exactly.
    scores = cross + b_ref[0]                                  # [TQ, L] + [1, L] broadcast

    # Numerically-stable softmax over j; normalization deferred past the PV matmul.
    m = jnp.max(scores, axis=-1, keepdims=True)                # [TQ, 1]
    p = jnp.exp(scores - m)                                    # [TQ, L] f32
    denom = jnp.sum(p, axis=-1, keepdims=True)                 # [TQ, 1]
    attn_unnorm = jnp.dot(p.astype(mdt), x_kv_m,
                          preferred_element_type=jnp.float32)  # [TQ, D] f32
    attn = attn_unnorm * pl.reciprocal(denom, approx=True)     # EUP reciprocal

    # Fused semantic-composite gates: x_q @ Wg_x + attn @ Wg_a + [bz|br|bf]
    gates = (jnp.dot(x_q.astype(mdt), wgx_ref[...].astype(mdt),
                     preferred_element_type=jnp.float32)
             + jnp.dot(attn.astype(mdt), wga_ref[...].astype(mdt),
                       preferred_element_type=jnp.float32)
             + bg_ref[...].astype(jnp.float32))                # [TQ, 3D]

    z = jnp.tanh(gates[:, :D])
    r = jax.nn.sigmoid(gates[:, D:2 * D])
    f = jax.nn.sigmoid(gates[:, 2 * D:])

    out_ref[0] = (r * x_q.astype(jnp.float32) + f * z).astype(out_ref.dtype)


def _pick_tiling(L, dtype):
    """Generation-aware query-tile size and VMEM limit."""
    try:
        vmem_cap = int(pltpu.get_tpu_info().vmem_capacity_bytes)
    except Exception:
        vmem_cap = 64 * 1024 * 1024                 # conservative (v7x) fallback
    if vmem_cap > 96 * 1024 * 1024:                 # v5e / v6e: 128 MiB physical VMEM
        vmem_limit = 100 * 1024 * 1024
        tq_cap = 512
    else:                                           # v7x: 64 MiB physical VMEM
        vmem_limit = 48 * 1024 * 1024
        tq_cap = 256

    gran = 16 if jnp.dtype(dtype).itemsize < 4 else 8   # sublane packing granularity
    # Keep ~3 live [tq, L] f32 softmax temporaries well under a quarter of the limit.
    budget_rows = max(gran, (vmem_limit // 4) // max(1, 3 * L * 4))
    cap = min(tq_cap, budget_rows)

    if L <= cap:
        tq = L
    else:
        tq = None
        t = (cap // gran) * gran
        while t >= gran:
            if L % t == 0:
                tq = t
                break
            t -= gran
        if tq is None:
            tq = L  # TODO(synk): pad/mask ragged sequence lengths instead of falling back.
    return tq, vmem_limit


def semantic_composite(x, att_w, wz, bz, wr, br, wf, bf, *, tq=None, mxu_dtype=None):
    """x: [B, L, D].  att_w: [3, D].  w{z,r,f}: [2D, D].  b{z,r,f}: [1, D]."""
    B, L, D = x.shape
    auto_tq, vmem_limit = _pick_tiling(L, x.dtype)
    if tq is None:
        tq = auto_tq
    assert L % tq == 0, "tq must divide L"
    nq = L // tq

    # Hoisted per-key bias b[b, j] = <x[b, j], w2>  (one tiny einsum, not per grid step).
    b_kv = jnp.einsum("bld,d->bl", x.astype(jnp.float32),
                      att_w[1].astype(jnp.float32)).reshape(B, 1, L)
    w3 = att_w[2:3]                                          # [1, D]

    # Gate weights fused across z|r|f and split by input half (x rows vs attn rows),
    # so the kernel never slices a [2D, 3D] slab.
    wg_x = jnp.concatenate([wz[:D], wr[:D], wf[:D]], axis=1)   # [D, 3D]
    wg_a = jnp.concatenate([wz[D:], wr[D:], wf[D:]], axis=1)   # [D, 3D]
    b_g = jnp.concatenate([bz, br, bf], axis=1)                # [1, 3D]

    def const(shape):
        # Grid-invariant parameter block: single VMEM buffer (no double-buffering).
        return pl.BlockSpec(shape, lambda bi, qi: (0,) * len(shape),
                            pipeline_mode=pl.Buffered(1))

    kernel = functools.partial(_semantic_composite_kernel, mxu_dtype=mxu_dtype)

    return pl.pallas_call(
        kernel,
        out_shape=jax.ShapeDtypeStruct((B, L, D), x.dtype),
        grid_spec=pltpu.PrefetchScalarGridSpec(
            num_scalar_prefetch=0,
            grid=(B, nq),   # batch axis first: 2-TC split keeps one full-L x fetch per batch
            in_specs=[
                pl.BlockSpec((1, L, D), lambda bi, qi: (bi, 0, 0)),  # x (single HBM stream)
                pl.BlockSpec((1, 1, L), lambda bi, qi: (bi, 0, 0)),  # precomputed b
                const((1, D)),                                       # w3
                const((D, 3 * D)),                                   # gate W (x half)
                const((D, 3 * D)),                                   # gate W (attn half)
                const((1, 3 * D)),                                   # gate bias
            ],
            out_specs=pl.BlockSpec((1, tq, D), lambda bi, qi: (bi, qi, 0)),
        ),
        compiler_params=pltpu.CompilerParams(
            dimension_semantics=("parallel", "parallel"),
            vmem_limit_bytes=vmem_limit,
        ),
    )(x, b_kv, w3, wg_x, wg_a, b_g)


def reference(x, att_w, wz, bz, wr, br, wf, bf):
    """Pure-JAX reference matching the PyTorch forward exactly."""
    B, L, D = x.shape
    x1 = jnp.broadcast_to(x[:, :, None, :], (B, L, L, D))
    x2 = jnp.broadcast_to(x[:, None, :, :], (B, L, L, D))
    x_concat = jnp.concatenate([x1, x2, x1 * x2], axis=-1)      # [B, L, L, 3D]
    w_att = att_w.reshape(3 * D)                                # [3D]
    attn_matrix = jnp.einsum("blkc,c->blk", x_concat, w_att)
    attn_weight = jax.nn.softmax(attn_matrix, axis=2)
    attn = jnp.einsum("blk,bkd->bld", attn_weight, x)
    xa = jnp.concatenate([x, attn], axis=-1)                    # [B, L, 2D]
    z = jnp.tanh(xa @ wz + bz)
    r = jax.nn.sigmoid(xa @ wr + br)
    f = jax.nn.sigmoid(xa @ wf + bf)
    return r * x + f * z


if __name__ == "__main__":
    B, L, D = 2, 16, 32   # small demo shapes (correctness only)

    key = jax.random.PRNGKey(0)
    kx, k1, k2, k3, k4, k5, k6, k7 = jax.random.split(key, 8)

    x = jax.random.normal(kx, (B, L, D), dtype=jnp.float32)

    # Parameter shapes derived from the PyTorch module:
    #   att_linear: Linear(3D -> 1, bias=False)   weight [1, 3D]  -> stored as [3, D]
    #   {z,r,f}_gate: Linear(2D -> D, bias=True)  weight [D, 2D]  -> stored transposed [2D, D]
    scale_att = 1.0 / jnp.sqrt(3.0 * D)
    scale_g = 1.0 / jnp.sqrt(2.0 * D)
    att_w = jax.random.uniform(k1, (3, D), jnp.float32, -scale_att, scale_att)
    wz = jax.random.uniform(k2, (2 * D, D), jnp.float32, -scale_g, scale_g)
    bz = jax.random.uniform(k3, (1, D), jnp.float32, -scale_g, scale_g)
    wr = jax.random.uniform(k4, (2 * D, D), jnp.float32, -scale_g, scale_g)
    br = jax.random.uniform(k5, (1, D), jnp.float32, -scale_g, scale_g)
    wf = jax.random.uniform(k6, (2 * D, D), jnp.float32, -scale_g, scale_g)
    bf = jax.random.uniform(k7, (1, D), jnp.float32, -scale_g, scale_g)

    ref = reference(x, att_w, wz, bz, wr, br, wf, bf)

    # tq=8 exercises the query-tiled grid: grid = (B, L // tq) = (2, 2).
    out = semantic_composite(x, att_w, wz, bz, wr, br, wf, bf, tq=8)
    out = jax.block_until_ready(out)
    assert out.shape == (B, L, D)
    # Tolerance accommodates the EUP approximate reciprocal used for the softmax
    # denominator (with approx=False the kernel matches to ~1e-5).
    assert jnp.allclose(out, ref, atol=2e-3, rtol=2e-3), "mismatch vs reference (f32 path)"

    # bf16-MXU variant (f32 accumulation / softmax statistics retained).
    out_bf16 = semantic_composite(x, att_w, wz, bz, wr, br, wf, bf, tq=8,
                                  mxu_dtype=jnp.bfloat16)
    out_bf16 = jax.block_until_ready(out_bf16)
    assert jnp.allclose(out_bf16, ref, atol=5e-2, rtol=5e-2), "mismatch vs reference (bf16 MXU)"

    print("KERNEL_OK")
</pallas_src>

<mosaic_0001>
module attributes {stable_mosaic.version = 11 : i64} {
  func.func @_semantic_composite_kernel(%arg0: i32, %arg1: i32, %arg2: memref<1x16x32xf32, #tpu.memory_space<vmem>>, %arg3: memref<1x1x16xf32, #tpu.memory_space<vmem>>, %arg4: memref<1x32xf32, #tpu.memory_space<vmem>>, %arg5: memref<32x96xf32, #tpu.memory_space<vmem>>, %arg6: memref<32x96xf32, #tpu.memory_space<vmem>>, %arg7: memref<1x96xf32, #tpu.memory_space<vmem>>, %arg8: memref<1x8x32xf32, #tpu.memory_space<vmem>>) attributes {dimension_semantics = [#tpu.dimension_semantics<parallel>, #tpu.dimension_semantics<parallel>], iteration_bounds = array<i64: 2, 2>, scalar_prefetch = 0 : i64, scratch_operands = 0 : i64, tpu.core_type = #tpu.core_type<tc>, window_params = [{transform_indices = @transform_0, window_bounds = array<i64: 1, 16, 32>}, {transform_indices = @transform_1, window_bounds = array<i64: 1, 1, 16>}, {pipeline_mode = #tpu.pipeline_mode<synchronous>, transform_indices = @transform_2, window_bounds = array<i64: 1, 32>}, {pipeline_mode = #tpu.pipeline_mode<synchronous>, transform_indices = @transform_3, window_bounds = array<i64: 32, 96>}, {pipeline_mode = #tpu.pipeline_mode<synchronous>, transform_indices = @transform_4, window_bounds = array<i64: 32, 96>}, {pipeline_mode = #tpu.pipeline_mode<synchronous>, transform_indices = @transform_5, window_bounds = array<i64: 1, 96>}, {transform_indices = @transform_6, window_bounds = array<i64: 1, 8, 32>}]} {
    %c0 = arith.constant 0 : index
    %c0_0 = arith.constant 0 : index
    %c0_1 = arith.constant 0 : index
    %0 = vector.load %arg2[%c0, %c0_0, %c0_1] : memref<1x16x32xf32, #tpu.memory_space<vmem>>, vector<1x16x32xf32>
    %1 = vector.shape_cast %0 : vector<1x16x32xf32> to vector<16x32xf32>
    %c8_i32 = arith.constant 8 : i32
    %2 = arith.muli %arg1, %c8_i32 : i32
    %3 = tpu.assume_multiple %2, 8 : i32
    %c0_2 = arith.constant 0 : index
    %4 = arith.index_cast %3 : i32 to index
    %c0_3 = arith.constant 0 : index
    %5 = vector.load %arg2[%c0_2, %4, %c0_3] : memref<1x16x32xf32, #tpu.memory_space<vmem>>, vector<1x8x32xf32>
    %6 = vector.shape_cast %5 : vector<1x8x32xf32> to vector<8x32xf32>
    %c0_4 = arith.constant 0 : index
    %c0_5 = arith.constant 0 : index
    %7 = vector.load %arg4[%c0_4, %c0_5] : memref<1x32xf32, #tpu.memory_space<vmem>>, vector<1x32xf32>
    %8 = vector.broadcast %7 : vector<1x32xf32> to vector<8x32xf32>
    %9 = arith.mulf %6, %8 : vector<8x32xf32>
    %cst = arith.constant dense<0.000000e+00> : vector<8x16xf32>
    %10 = tpu.matmul %9, %1, %cst {dimension_numbers = #tpu.dot_dimension_numbers<[1], [1], [0], [0], [0, 0, 1, 0], [], []>} : vector<8x32xf32>, vector<16x32xf32>, vector<8x16xf32> -> vector<8x16xf32>
    %c0_6 = arith.constant 0 : index
    %c0_7 = arith.constant 0 : index
    %c0_8 = arith.constant 0 : index
    %11 = vector.load %arg3[%c0_6, %c0_7, %c0_8] : memref<1x1x16xf32, #tpu.memory_space<vmem>>, vector<1x1x16xf32>
    %12 = vector.shape_cast %11 : vector<1x1x16xf32> to vector<1x16xf32>
    %13 = vector.broadcast %12 : vector<1x16xf32> to vector<8x16xf32>
    %14 = arith.addf %10, %13 : vector<8x16xf32>
    %cst_9 = arith.constant dense<0xFF800000> : vector<8xf32>
    %15 = vector.multi_reduction <maximumf>, %14, %cst_9 [1] : vector<8x16xf32> to vector<8xf32>
    %16 = vector.shape_cast %15 : vector<8xf32> to vector<8x1xf32>
    %17 = vector.broadcast %16 : vector<8x1xf32> to vector<8x16xf32>
    %18 = arith.subf %14, %17 : vector<8x16xf32>
    %19 = math.exp %18 : vector<8x16xf32>
    %cst_10 = arith.constant dense<0.000000e+00> : vector<8xf32>
    %20 = vector.multi_reduction <add>, %19, %cst_10 [1] : vector<8x16xf32> to vector<8xf32>
    %21 = vector.shape_cast %20 : vector<8xf32> to vector<8x1xf32>
    %cst_11 = arith.constant dense<0.000000e+00> : vector<8x32xf32>
    %22 = tpu.matmul %19, %1, %cst_11 {dimension_numbers = #tpu.dot_dimension_numbers<[1], [0], [0], [1], [0, 0, 1, 1], [], []>} : vector<8x16xf32>, vector<16x32xf32>, vector<8x32xf32> -> vector<8x32xf32>
    %23 = tpu.reciprocal %21 {approx = true} : vector<8x1xf32> -> vector<8x1xf32>
    %24 = vector.broadcast %23 : vector<8x1xf32> to vector<8x32xf32>
    %25 = arith.mulf %22, %24 : vector<8x32xf32>
    %c0_12 = arith.constant 0 : index
    %c0_13 = arith.constant 0 : index
    %26 = vector.load %arg5[%c0_12, %c0_13] : memref<32x96xf32, #tpu.memory_space<vmem>>, vector<32x96xf32>
    %cst_14 = arith.constant dense<0.000000e+00> : vector<8x96xf32>
    %27 = tpu.matmul %6, %26, %cst_14 {dimension_numbers = #tpu.dot_dimension_numbers<[1], [0], [0], [1], [0, 0, 1, 1], [], []>} : vector<8x32xf32>, vector<32x96xf32>, vector<8x96xf32> -> vector<8x96xf32>
    %c0_15 = arith.constant 0 : index
    %c0_16 = arith.constant 0 : index
    %28 = vector.load %arg6[%c0_15, %c0_16] : memref<32x96xf32, #tpu.memory_space<vmem>>, vector<32x96xf32>
    %cst_17 = arith.constant dense<0.000000e+00> : vector<8x96xf32>
    %29 = tpu.matmul %25, %28, %cst_17 {dimension_numbers = #tpu.dot_dimension_numbers<[1], [0], [0], [1], [0, 0, 1, 1], [], []>} : vector<8x32xf32>, vector<32x96xf32>, vector<8x96xf32> -> vector<8x96xf32>
    %30 = arith.addf %27, %29 : vector<8x96xf32>
    %c0_18 = arith.constant 0 : index
    %c0_19 = arith.constant 0 : index
    %31 = vector.load %arg7[%c0_18, %c0_19] : memref<1x96xf32, #tpu.memory_space<vmem>>, vector<1x96xf32>
    %32 = vector.broadcast %31 : vector<1x96xf32> to vector<8x96xf32>
    %33 = arith.addf %30, %32 : vector<8x96xf32>
    %34 = vector.extract_strided_slice %33 {offsets = [0, 0], sizes = [8, 32], strides = [1, 1]} : vector<8x96xf32> to vector<8x32xf32>
    %35 = math.tanh %34 : vector<8x32xf32>
    %36 = vector.extract_strided_slice %33 {offsets = [0, 32], sizes = [8, 32], strides = [1, 1]} : vector<8x96xf32> to vector<8x32xf32>
    %37 = arith.negf %36 : vector<8x32xf32>
    %38 = math.exp %37 : vector<8x32xf32>
    %cst_20 = arith.constant 1.000000e+00 : f32
    %39 = vector.broadcast %cst_20 : f32 to vector<8x32xf32>
    %40 = arith.addf %39, %38 : vector<8x32xf32>
    %41 = arith.divf %39, %40 : vector<8x32xf32>
    %42 = vector.extract_strided_slice %33 {offsets = [0, 64], sizes = [8, 32], strides = [1, 1]} : vector<8x96xf32> to vector<8x32xf32>
    %43 = arith.negf %42 : vector<8x32xf32>
    %44 = math.exp %43 : vector<8x32xf32>
    %cst_21 = arith.constant 1.000000e+00 : f32
    %45 = vector.broadcast %cst_21 : f32 to vector<8x32xf32>
    %46 = arith.addf %45, %44 : vector<8x32xf32>
    %47 = arith.divf %45, %46 : vector<8x32xf32>
    %48 = arith.mulf %41, %6 : vector<8x32xf32>
    %49 = arith.mulf %47, %35 : vector<8x32xf32>
    %50 = arith.addf %48, %49 : vector<8x32xf32>
    %c0_22 = arith.constant 0 : index
    %c0_23 = arith.constant 0 : index
    %c0_24 = arith.constant 0 : index
    %51 = vector.load %arg8[%c0_22, %c0_23, %c0_24] : memref<1x8x32xf32, #tpu.memory_space<vmem>>, vector<1x8x32xf32>
    %52 = vector.shape_cast %51 : vector<1x8x32xf32> to vector<8x32xf32>
    %53 = vector.shape_cast %50 : vector<8x32xf32> to vector<1x8x32xf32>
    tpu.vector_store %arg8[%c0_22, %c0_23, %c0_24], %53 {strides = array<i32>} : memref<1x8x32xf32, #tpu.memory_space<vmem>>, vector<1x8x32xf32>,
    return
  }
  func.func @transform_0(%arg0: i32, %arg1: i32) -> (i32, i32, i32) {
    %c0_i32 = arith.constant 0 : i32
    %c0_i32_0 = arith.constant 0 : i32
    %c0_i32_1 = arith.constant 0 : i32
    return %arg0, %c0_i32, %c0_i32_0 : i32, i32, i32
  }
  func.func @transform_1(%arg0: i32, %arg1: i32) -> (i32, i32, i32) {
    %c0_i32 = arith.constant 0 : i32
    %c0_i32_0 = arith.constant 0 : i32
    %c0_i32_1 = arith.constant 0 : i32
    return %arg0, %c0_i32, %c0_i32_0 : i32, i32, i32
  }
  func.func @transform_2(%arg0: i32, %arg1: i32) -> (i32, i32) {
    %c0_i32 = arith.constant 0 : i32
    %c0_i32_0 = arith.constant 0 : i32
    %c0_i32_1 = arith.constant 0 : i32
    return %c0_i32, %c0_i32_0 : i32, i32
  }
  func.func @transform_3(%arg0: i32, %arg1: i32) -> (i32, i32) {
    %c0_i32 = arith.constant 0 : i32
    %c0_i32_0 = arith.constant 0 : i32
    %c0_i32_1 = arith.constant 0 : i32
    return %c0_i32, %c0_i32_0 : i32, i32
  }
  func.func @transform_4(%arg0: i32, %arg1: i32) -> (i32, i32) {
    %c0_i32 = arith.constant 0 : i32
    %c0_i32_0 = arith.constant 0 : i32
    %c0_i32_1 = arith.constant 0 : i32
    return %c0_i32, %c0_i32_0 : i32, i32
  }
  func.func @transform_5(%arg0: i32, %arg1: i32) -> (i32, i32) {
    %c0_i32 = arith.constant 0 : i32
    %c0_i32_0 = arith.constant 0 : i32
    %c0_i32_1 = arith.constant 0 : i32
    return %c0_i32, %c0_i32_0 : i32, i32
  }
  func.func @transform_6(%arg0: i32, %arg1: i32) -> (i32, i32, i32) {
    %c0_i32 = arith.constant 0 : i32
    %c0_i32_0 = arith.constant 0 : i32
    return %arg0, %arg1, %c0_i32 : i32, i32, i32
  }
}

</mosaic_0001>

<llo_original>
// kernel: tpu_custom_call.1
$region0: #{tpu_custom_call.1}
  #allocation0 [shape = 'u32[]', space=smem, size = 0x4, offset = 0x4, fixed_abs, tag = 'smem constant byte address 0x4 - core index']
  #allocation1 [shape = 'u32[144,128]{1,0:T(1,128)}', space=vmem, size = 0x12000, scoped, tag = 'internal scratch']
  %s0 = inlined_call_operand.hbm [shape: f32[2,16,32], index: 0, kind: input, shape index: {}]
  %s1 = inlined_call_operand.vmem [shape: f32[2,1,16], index: 1, kind: input, shape index: {}]
  %s2 = inlined_call_operand.vmem [shape: f32[1,32], index: 2, kind: input, shape index: {}]
  %s3 = inlined_call_operand.hbm [shape: f32[32,96], index: 3, kind: input, shape index: {}]
  %s4 = inlined_call_operand.hbm [shape: f32[32,96], index: 4, kind: input, shape index: {}]
  %s5 = inlined_call_operand.vmem [shape: f32[1,96], index: 5, kind: input, shape index: {}]
  %s6 = inlined_call_operand.hbm [shape: f32[2,16,32], index: 6, kind: output, shape index: {}]
  %s7 = sld [smem:[#allocation0]]
  $region69: #{tpu_custom_call.1} parent=0
    _
  %s9 = ssub.s32 1, %s7
  %s10 = scalar_select 0, %s9, %s7
  $region1: #{tpu_custom_call.1} parent=0
    #allocation2 [shape = 'u8[16384]{0}', space=vmem, size = 0x4000, scoped, tag = 'input window, operand 0']
    #allocation3 [shape = 's32[2]{0}', space=sflag, size = 0x8, scoped, tag = 'scoped memory for tpu_custom_call.1']
    #allocation4 [shape = 's32[2]{0}', space=sflag, size = 0x8, scoped, tag = 'scoped memory for tpu_custom_call.1']
    #allocation5 [shape = 'u8[16384]{0}', space=vmem, size = 0x4000, scoped, tag = 'input window, operand 3, single buffered']
    #allocation6 [shape = 's32[1]{0}', space=sflag, size = 0x4, scoped, tag = 'scoped memory for tpu_custom_call.1']
    #allocation7 [shape = 'u8[16384]{0}', space=vmem, size = 0x4000, scoped, tag = 'input window, operand 4, single buffered']
    #allocation8 [shape = 'u8[8192]{0}', space=vmem, size = 0x2000, scoped, tag = 'output window, operand 0']
    %11 = vsyncpa [#allocation3], 0
    %s12 = scalar_lea.sflag [#allocation3], 1
    %13 = vsyncpa %s12, 0
    %14 = vsyncpa [#allocation6], 0
    %15 = vsyncpa [#allocation4], 0
    %s16 = scalar_lea.sflag [#allocation4], 1
    %17 = vsyncpa %s16, 0
    loop: start=0, step=1, limit=6
    $region2: #{tpu_custom_call.1} parent=1 // loop_pre_header
      _
    $region3: #{tpu_custom_call.1} parent=1 // loop_header
      %s19 = sphi 0, %s23
      %p20 = scmp.ge.s32.totalorder %s19, 6
      %s26 = sphi 0, %s38
      %s27 = sphi 0, %s34
      %s28 = sphi 0, %s26
      %s29 = sphi 0, %s27
      %s30 = sphi 0, %s28
      %s31 = sphi 0, %s29
      %s41 = sphi 0, %s43
      %s44 = sphi 0, %s41
      %s45 = sphi 0, %s44
      %s61 = sphi 0, %s45
      %s67 = sphi 0, %s69
      %s70 = sphi 0, %s67
      %s71 = sphi 0, %s70
      %s87 = sphi 0, %s71
      %s91 = sphi 0, %s91
      %s93 = sphi 0, %s91
      %s94 = sphi 0, %s93
      %s108 = sphi 0, %s94
      %s112 = sphi 0, %s112
      %s114 = sphi 0, %s112
      %s115 = sphi 0, %s114
      %s129 = sphi 0, %s115
      %s133 = sphi 0, %s133
      %s135 = sphi 0, %s133
      %s136 = sphi 0, %s135
      %s150 = sphi 0, %s136
      %s154 = sphi 0, %s154
      %s156 = sphi 0, %s154
      %s157 = sphi 0, %s156
      %s171 = sphi 0, %s157
      %s179 = sphi 0, %s181
      %s182 = sphi 0, %s179
      %s183 = sphi 0, %s182
      %s199 = sphi 0, %s183
    $region4: #{tpu_custom_call.1} parent=1 // loop_header_branch
      %22 = sbr.rel (%p20) target = $region8
    $region5: #{tpu_custom_call.1} parent=1 // loop_body
      %s24 = ssub.s32 %s19, 1
      %s25 = ssub.s32 %s19, 2
      %s32 = sadd.s32 1, %s27
      %p33 = scmp.ge.s32.totalorder %s32, 2
      %s34 = scalar_select %p33, 0, %s32
      %s35 = sadd.s32 1, %s26
      %s36 = scalar_select %p33, %s35, %s26
      %p37 = scmp.ge.s32.totalorder %s36, 2
      %s38 = scalar_select %p37, 0, %s36
      %s39 = ssub.s32 %s26, %s38
      %p40 = scmp.eq.s32.totalorder %s39, 0
      %s42 = sadd.s32 %s41, 1
      %s43 = scalar_select %p40, %s41, %s42
      %p46 = pneg %p40
      %p47 = scmp.eq.s32.totalorder %s19, 3
      %p48 = por %p46, %p47
      %p49 = scmp.ne.s32.totalorder %s41, %s44
      %p50 = scmp.eq.s32.totalorder %s19, 0
      %p51 = por %p49, %p50
      %p52 = scmp.ne.s32.totalorder %s41, %s44
      %p53 = scmp.eq.s32.totalorder %s24, 3
      %p54 = por %p52, %p53
      %p55 = scmp.ne.s32.totalorder %s44, %s45
      %p56 = scmp.eq.s32.totalorder %s24, 0
      %p57 = por %p55, %p56
      %p58 = scmp.ne.s32.totalorder %s44, %s45
      %p59 = scmp.eq.s32.totalorder %s25, 3
      %p60 = por %p58, %p59
      %p62 = scmp.ne.s32.totalorder %s45, %s61
      %p63 = scmp.eq.s32.totalorder %s25, 0
      %p64 = por %p62, %p63
      %s65 = ssub.s32 %s26, %s38
      %p66 = scmp.eq.s32.totalorder %s65, 0
      %s68 = sadd.s32 %s67, 1
      %s69 = scalar_select %p66, %s67, %s68
      %p72 = pneg %p66
      %p73 = scmp.eq.s32.totalorder %s19, 3
      %p74 = por %p72, %p73
      %p75 = scmp.ne.s32.totalorder %s67, %s70
      %p76 = scmp.eq.s32.totalorder %s19, 0
      %p77 = por %p75, %p76
      %p78 = scmp.ne.s32.totalorder %s67, %s70
      %p79 = scmp.eq.s32.totalorder %s24, 3
      %p80 = por %p78, %p79
      %p81 = scmp.ne.s32.totalorder %s70, %s71
      %p82 = scmp.eq.s32.totalorder %s24, 0
      %p83 = por %p81, %p82
      %p84 = scmp.ne.s32.totalorder %s70, %s71
      %p85 = scmp.eq.s32.totalorder %s25, 3
      %p86 = por %p84, %p85
      %p88 = scmp.ne.s32.totalorder %s71, %s87
      %p89 = scmp.eq.s32.totalorder %s25, 0
      %p90 = por %p88, %p89
      %s92 = sadd.s32 %s91, 1
      %p95 = scmp.eq.s32.totalorder %s19, 3
      %p96 = scmp.ne.s32.totalorder %s91, %s93
      %p97 = scmp.eq.s32.totalorder %s19, 0
      %p98 = por %p96, %p97
      %p99 = scmp.ne.s32.totalorder %s91, %s93
      %p100 = scmp.eq.s32.totalorder %s24, 3
      %p101 = por %p99, %p100
      %p102 = scmp.ne.s32.totalorder %s93, %s94
      %p103 = scmp.eq.s32.totalorder %s24, 0
      %p104 = por %p102, %p103
      %p105 = scmp.ne.s32.totalorder %s93, %s94
      %p106 = scmp.eq.s32.totalorder %s25, 3
      %p107 = por %p105, %p106
      %p109 = scmp.ne.s32.totalorder %s94, %s108
      %p110 = scmp.eq.s32.totalorder %s25, 0
      %p111 = por %p109, %p110
      %s113 = sadd.s32 %s112, 1
      %p116 = scmp.eq.s32.totalorder %s19, 3
      %p117 = scmp.ne.s32.totalorder %s112, %s114
      %p118 = scmp.eq.s32.totalorder %s19, 0
      %p119 = por %p117, %p118
      %p120 = scmp.ne.s32.totalorder %s112, %s114
      %p121 = scmp.eq.s32.totalorder %s24, 3
      %p122 = por %p120, %p121
      %p123 = scmp.ne.s32.totalorder %s114, %s115
      %p124 = scmp.eq.s32.totalorder %s24, 0
      %p125 = por %p123, %p124
      %p126 = scmp.ne.s32.totalorder %s114, %s115
      %p127 = scmp.eq.s32.totalorder %s25, 3
      %p128 = por %p126, %p127
      %p130 = scmp.ne.s32.totalorder %s115, %s129
      %p131 = scmp.eq.s32.totalorder %s25, 0
      %p132 = por %p130, %p131
      %s134 = sadd.s32 %s133, 1
      %p137 = scmp.eq.s32.totalorder %s19, 3
      %p138 = scmp.ne.s32.totalorder %s133, %s135
      %p139 = scmp.eq.s32.totalorder %s19, 0
      %p140 = por %p138, %p139
      %p141 = scmp.ne.s32.totalorder %s133, %s135
      %p142 = scmp.eq.s32.totalorder %s24, 3
      %p143 = por %p141, %p142
      %p144 = scmp.ne.s32.totalorder %s135, %s136
      %p145 = scmp.eq.s32.totalorder %s24, 0
      %p146 = por %p144, %p145
      %p147 = scmp.ne.s32.totalorder %s135, %s136
      %p148 = scmp.eq.s32.totalorder %s25, 3
      %p149 = por %p147, %p148
      %p151 = scmp.ne.s32.totalorder %s136, %s150
      %p152 = scmp.eq.s32.totalorder %s25, 0
      %p153 = por %p151, %p152
      %s155 = sadd.s32 %s154, 1
      %p158 = scmp.eq.s32.totalorder %s19, 3
      %p159 = scmp.ne.s32.totalorder %s154, %s156
      %p160 = scmp.eq.s32.totalorder %s19, 0
      %p161 = por %p159, %p160
      %p162 = scmp.ne.s32.totalorder %s154, %s156
      %p163 = scmp.eq.s32.totalorder %s24, 3
      %p164 = por %p162, %p163
      %p165 = scmp.ne.s32.totalorder %s156, %s157
      %p166 = scmp.eq.s32.totalorder %s24, 0
      %p167 = por %p165, %p166
      %p168 = scmp.ne.s32.totalorder %s156, %s157
      %p169 = scmp.eq.s32.totalorder %s25, 3
      %p170 = por %p168, %p169
      %p172 = scmp.ne.s32.totalorder %s157, %s171
      %p173 = scmp.eq.s32.totalorder %s25, 0
      %p174 = por %p172, %p173
      %s175 = ssub.s32 %s26, %s38
      %s176 = ssub.s32 %s27, %s34
      %s177 = sor.u32 %s175, %s176
      %p178 = scmp.eq.s32.totalorder %s177, 0
      %s180 = sadd.s32 %s179, 1
      %s181 = scalar_select %p178, %s179, %s180
      %p184 = pneg %p178
      %p185 = scmp.eq.s32.totalorder %s19, 3
      %p186 = por %p184, %p185
      %p187 = scmp.ne.s32.totalorder %s179, %s182
      %p188 = scmp.eq.s32.totalorder %s19, 0
      %p189 = por %p187, %p188
      %p190 = scmp.ne.s32.totalorder %s179, %s182
      %p191 = scmp.eq.s32.totalorder %s24, 3
      %p192 = por %p190, %p191
      %p193 = scmp.ne.s32.totalorder %s182, %s183
      %p194 = scmp.eq.s32.totalorder %s24, 0
      %p195 = por %p193, %p194
      %p196 = scmp.ne.s32.totalorder %s182, %s183
      %p197 = scmp.eq.s32.totalorder %s25, 3
      %p198 = por %p196, %p197
      %p200 = scmp.ne.s32.totalorder %s183, %s199
      %p201 = scmp.eq.s32.totalorder %s25, 0
      %p202 = por %p200, %p201
      %p203 = scmp.le.s32.totalorder 1, %s19
      %p204 = scmp.lt.s32.totalorder %s19, 5
      %p205 = pnand %p203, %p204
      %p206 = pneg %p205
      // Predicated region
      $region9: #{tpu_custom_call.1} parent=5 // pred_check
        _
      $region10: #{tpu_custom_call.1} parent=5 // pred_check_branch
        %208 = sbr.rel (%p205) target = $region12
      $region11: #{tpu_custom_call.1} parent=5 // pred_region
        %s209 = ssub.s32 %s19, 1
        // Predicated region
        $region13: #{tpu_custom_call.1} parent=11 // pred_check
          %p210 = pneg %p104
        $region14: #{tpu_custom_call.1} parent=11 // pred_check_branch
          %212 = sbr.rel (%p210) target = $region16
        $region15: #{tpu_custom_call.1} parent=11 // pred_region
          _
        $region16: #{tpu_custom_call.1} parent=11 // pred_fallthru
          _
        // Predicated region
        $region17: #{tpu_custom_call.1} parent=11 // pred_check
          %p213 = pneg %p125
        $region18: #{tpu_custom_call.1} parent=11 // pred_check_branch
          %215 = sbr.rel (%p213) target = $region20
        $region19: #{tpu_custom_call.1} parent=11 // pred_region
          %s217 = ssub.s32 512, 512
          %218 = vsyncadd [#allocation6], %s217
          %s219 = sshll.u32 [#allocation5], 4
          %s220 = int_to_ptr.vmem [resolvable:$true] %s219
          %225 = dma.hbm_to_vmem [thread:$0]  %s3, 512, %s220, [#allocation6], 128, 128, 8
        $region20: #{tpu_custom_call.1} parent=11 // pred_fallthru
          _
        // Predicated region
        $region21: #{tpu_custom_call.1} parent=11 // pred_check
          %p226 = pneg %p146
        $region22: #{tpu_custom_call.1} parent=11 // pred_check_branch
          %228 = sbr.rel (%p226) target = $region24
        $region23: #{tpu_custom_call.1} parent=11 // pred_region
          %s230 = ssub.s32 512, 512
          %231 = vsyncadd [#allocation6], %s230
          %s232 = sshll.u32 [#allocation7], 4
          %s233 = int_to_ptr.vmem [resolvable:$true] %s232
          %238 = dma.hbm_to_vmem [thread:$0]  %s4, 512, %s233, [#allocation6], 128, 128, 8
        $region24: #{tpu_custom_call.1} parent=11 // pred_fallthru
          _
        // Predicated region
        $region25: #{tpu_custom_call.1} parent=11 // pred_check
          %p239 = pneg %p167
        $region26: #{tpu_custom_call.1} parent=11 // pred_check_branch
          %241 = sbr.rel (%p239) target = $region28
        $region27: #{tpu_custom_call.1} parent=11 // pred_region
          _
        $region28: #{tpu_custom_call.1} parent=11 // pred_fallthru
          _
      $region12: #{tpu_custom_call.1} parent=5 // pred_fallthru
        _
      %p242 = scmp.lt.s32.totalorder %s19, 4
      // Predicated region
      $region29: #{tpu_custom_call.1} parent=5 // pred_check
        %p243 = pneg %p242
      $region30: #{tpu_custom_call.1} parent=5 // pred_check_branch
        %245 = sbr.rel (%p243) target = $region32
      $region31: #{tpu_custom_call.1} parent=5 // pred_region
        // Predicated region
        $region33: #{tpu_custom_call.1} parent=31 // pred_check
          %p246 = pneg %p51
        $region34: #{tpu_custom_call.1} parent=31 // pred_check_branch
          %248 = sbr.rel (%p246) target = $region36
        $region35: #{tpu_custom_call.1} parent=31 // pred_region
          %s249 = sand.u32 %s41, 1
          %s250 = scalar_lea.sflag [#allocation3], %s249
          %s251 = sand.u32 %s41, 1
          %s252 = smul.addr %s251, 16
          %s253 = scalar_lea.vmem [#allocation2], %s252
          %s255 = ssub.s32 256, 256
          %256 = vsyncadd %s250, %s255
          %s257 = smul.addr %s26, 2
          %s258 = smul.addr %s257, 128
          %s259 = scalar_lea.hbm %s0, %s258
          %s260 = sshll.u32 %s253, 4
          %s261 = int_to_ptr.vmem [resolvable:$true] %s260
          %266 = dma.hbm_to_vmem [thread:$0]  %s259, 256, %s261, %s250, 128, 128, 8
        $region36: #{tpu_custom_call.1} parent=31 // pred_fallthru
          _
        // Predicated region
        $region37: #{tpu_custom_call.1} parent=31 // pred_check
          %p267 = pneg %p77
        $region38: #{tpu_custom_call.1} parent=31 // pred_check_branch
          %269 = sbr.rel (%p267) target = $region40
        $region39: #{tpu_custom_call.1} parent=31 // pred_region
          %p270 = scmp.lt.s32.totalorder %s26, 1
          %s271 = scalar_select %p270, %s26, 1
          %s272 = scalar_lea.vmem %s1, %s271
        $region40: #{tpu_custom_call.1} parent=31 // pred_fallthru
          _
      $region32: #{tpu_custom_call.1} parent=5 // pred_fallthru
        _
      %p273 = scmp.le.s32.totalorder 1, %s19
      %p274 = scmp.lt.s32.totalorder %s19, 5
      %p275 = pnand %p273, %p274
      %p276 = pneg %p275
      // Predicated region
      $region41: #{tpu_custom_call.1} parent=5 // pred_check
        _
      $region42: #{tpu_custom_call.1} parent=5 // pred_check_branch
        %278 = sbr.rel (%p275) target = $region44
      $region43: #{tpu_custom_call.1} parent=5 // pred_region
        %s279 = ssub.s32 %s19, 1
        %s280 = sand.u32 %s44, 1
        %s281 = scalar_lea.sflag [#allocation3], %s280
        %s282 = sand.u32 %s44, 1
        %s283 = smul.addr %s282, 16
        %s284 = scalar_lea.vmem [#allocation2], %s283
        // Predicated region
        $region45: #{tpu_custom_call.1} parent=43 // pred_check
          %p285 = pneg %p57
        $region46: #{tpu_custom_call.1} parent=43 // pred_check_branch
          %287 = sbr.rel (%p285) target = $region48
        $region47: #{tpu_custom_call.1} parent=43 // pred_region
          %288 = dma.done %s281, 256
        $region48: #{tpu_custom_call.1} parent=43 // pred_fallthru
          _
        // Predicated region
        $region49: #{tpu_custom_call.1} parent=43 // pred_check
          %p289 = pneg %p125
        $region50: #{tpu_custom_call.1} parent=43 // pred_check_branch
          %291 = sbr.rel (%p289) target = $region52
        $region51: #{tpu_custom_call.1} parent=43 // pred_region
          %292 = dma.done [#allocation6], 512
        $region52: #{tpu_custom_call.1} parent=43 // pred_fallthru
          _
        // Predicated region
        $region53: #{tpu_custom_call.1} parent=43 // pred_check
          %p293 = pneg %p146
        $region54: #{tpu_custom_call.1} parent=43 // pred_check_branch
          %295 = sbr.rel (%p293) target = $region56
        $region55: #{tpu_custom_call.1} parent=43 // pred_region
          %296 = dma.done [#allocation6], 512
        $region56: #{tpu_custom_call.1} parent=43 // pred_fallthru
          _
        %s297 = sand.u32 %s44, 1
        %s298 = scalar_lea.sflag [#allocation3], %s297
        %s299 = sand.u32 %s44, 1
        %s300 = smul.addr %s299, 16
        %s301 = scalar_lea.vmem [#allocation2], %s300
        %p302 = pneg %p57
        %p303 = pneg %p54
        %p304 = scmp.lt.s32.totalorder %s28, 1
        %s305 = scalar_select %p304, %s28, 1
        %s306 = scalar_lea.vmem %s1, %s305
        %p307 = pneg %p83
        %p308 = pneg %p80
        %p309 = pneg %p104
        %p310 = pneg %p101
        %p311 = pneg %p125
        %p312 = pneg %p122
        %p313 = pneg %p146
        %p314 = pneg %p143
        %p315 = pneg %p167
        %p316 = pneg %p164
        %p317 = pneg %p195
        %p318 = pneg %p192
        %s319 = sand.u32 %s182, 1
        %s320 = scalar_lea.sflag [#allocation4], %s319
        %s321 = sand.u32 %s182, 1
        %s322 = smul.addr %s321, 8
        %s323 = scalar_lea.vmem [#allocation8], %s322
        %p324 = scmp.lt.s32.totalorder %s28, 1
        %s325 = scalar_select %p324, %s28, 1
        %s326 = scalar_lea.vmem %s1, %s325
        %v327 = vld [vmem:[%s284] sm:$0xff]
        %v328 = vld [vmem:[%s284 + $0x8] sm:$0xff]
        %s329 = smul.u32 %s29, 8
        %s330 = scalar_lea.vmem %s284, %s329 [#allocation2]
        %v331 = vld [vmem:[%s330] sm:$0xff]
        %v332 = vld [vmem:[%s2] sm:$0x1]
        %v334 = vlaneseq
        %v335 = vshrl.u32 %v334, 7
        %v336 = vsub.s32 0, %v335
        %v337 = vrot.slane %v332, %v336
        %v339 = vmul.f32 %v331, %v337
        %v340 = vld [vmem:[%s326] sm:$0x1]
        %v342 = vlaneseq
        %v343 = vshrl.u32 %v342, 7
        %v344 = vsub.s32 0, %v343
        %v345 = vrot.slane %v340, %v344
        %vm347 = vcmask 261120
        %v349 = vsel %vm347, %v339, 0
        %v352 = vsel %vm347, %v327, 0
        %v355 = vsel %vm347, %v328, 0
        %357 = vmatprep.subr.mxu0 0.0
        %358 = vmatpush1.xpose.msra.mxu0 %v352
        %359 = vmatprep.subr.mxu0 0.0
        %360 = vmatpush1.xpose.msra.mxu0 %v355
        %361 = vmatprep.subr.mxu0 0.0
        %362 = vmatpush1.xpose.msra.mxu0 0.0
        %363 = vmatprep.subr.mxu0 0.0
        %364 = vmatpush1.xpose.msra.mxu0 0.0
        %365 = vmatprep.subr.mxu0 0.0
        %366 = vmatpush1.xpose.msra.mxu0 0.0
        %367 = vmatprep.subr.mxu0 0.0
        %368 = vmatpush1.xpose.msra.mxu0 0.0
        %369 = vmatprep.subr.mxu0 0.0
        %370 = vmatpush1.xpose.msra.mxu0 0.0
        %371 = vmatprep.subr.mxu0 0.0
        %372 = vmatpush1.xpose.msra.mxu0 0.0
        %373 = vmatprep.subr.mxu0 0.0
        %374 = vmatpush1.xpose.msra.mxu0 0.0
        %375 = vmatprep.subr.mxu0 0.0
        %376 = vmatpush1.xpose.msra.mxu0 0.0
        %377 = vmatprep.subr.mxu0 0.0
        %378 = vmatpush1.xpose.msra.mxu0 0.0
        %379 = vmatprep.subr.mxu0 0.0
        %380 = vmatpush1.xpose.msra.mxu0 0.0
        %381 = vmatprep.subr.mxu0 0.0
        %382 = vmatpush1.xpose.msra.mxu0 0.0
        %383 = vmatprep.subr.mxu0 0.0
        %384 = vmatpush1.xpose.msra.mxu0 0.0
        %385 = vmatprep.subr.mxu0 0.0
        %386 = vmatpush1.xpose.msra.mxu0 0.0
        %387 = vmatprep.subr.mxu0 0.0
        %388 = vmatpush1.xpose.msra.mxu0 0.0
        %389 = vmatprep.subr.mxu0 0.0
        %390 = vmatpush1.xpose.msra.mxu0 0.0
        %391 = vmatprep.subr.mxu0 0.0
        %392 = vmatpush1.xpose.msra.mxu0 0.0
        %393 = vmatprep.subr.mxu0 0.0
        %394 = vmatpush1.xpose.msra.mxu0 0.0
        %395 = vmatprep.subr.mxu0 0.0
        %396 = vmatpush1.xpose.msra.mxu0 0.0
        %397 = vmatprep.subr.mxu0 0.0
        %398 = vmatpush1.xpose.msra.mxu0 0.0
        %399 = vmatprep.subr.mxu0 0.0
        %400 = vmatpush1.xpose.msra.mxu0 0.0
        %401 = vmatprep.subr.mxu0 0.0
        %402 = vmatpush1.xpose.msra.mxu0 0.0
        %403 = vmatprep.subr.mxu0 0.0
        %404 = vmatpush1.xpose.msra.mxu0 0.0
        %405 = vmatprep.subr.mxu0 0.0
        %406 = vmatpush1.xpose.msra.mxu0 0.0
        %407 = vmatprep.subr.mxu0 0.0
        %408 = vmatpush1.xpose.msra.mxu0 0.0
        %409 = vmatprep.subr.mxu0 0.0
        %410 = vmatpush1.xpose.msra.mxu0 0.0
        %411 = vmatprep.subr.mxu0 0.0
        %412 = vmatpush1.xpose.msra.mxu0 0.0
        %413 = vmatprep.subr.mxu0 0.0
        %414 = vmatpush1.xpose.msra.mxu0 0.0
        %415 = vmatprep.subr.mxu0 0.0
        %416 = vmatpush1.xpose.msra.mxu0 0.0
        %417 = vmatprep.subr.mxu0 0.0
        %418 = vmatpush1.xpose.msra.mxu0 0.0
        %419 = vmatprep.subr.mxu0 0.0
        %420 = vmatpush1.xpose.msra.mxu0 0.0
        %421 = vmatprep.mubr.f32.mxu0 0.0
        %422 = vmatmul.mubr.f32.gmra.mrb[0].mxu0 %v349
        %v423 = vpop.f32.mrb[0].mxu0
        %v424 = vadd.f32 %v345, %v423
        %v425 = vpop.f32.mrb[0].mxu0
        %426 = vdwg.mxu0
        %vm427 = vcmask 130048
        %v428 = vsel %vm427, %v424, -inf
        %429 = vmax.xlane.f32.xlu0 %v428
        %v430 = vpop.xlane.xlu0 %429
        %v431 = vsub.f32 %v424, %v430
        %v432 = vmul.f32 %v431, 1.442695
        %v433 = vpow.pop %v432
        %v434 = vsel %vm427, %v433, 0.0
        %435 = vadd.xlane.f32.xlu0 %v434
        %v436 = vpop.xlane.xlu0 %435
        %v438 = vsel %vm427, %v433, 0
        %440 = vmatprep.subr.mxu0 0.0
        %441 = vmatpush1.msra.mxu0 %v327
        %442 = vmatprep.subr.mxu0 0.0
        %443 = vmatpush1.msra.mxu0 %v328
        %444 = vmatprep.subr.mxu0 0.0
        %445 = vmatpush1.msra.mxu0 0.0
        %446 = vmatprep.subr.mxu0 0.0
        %447 = vmatpush1.msra.mxu0 0.0
        %448 = vmatprep.subr.mxu0 0.0
        %449 = vmatpush1.msra.mxu0 0.0
        %450 = vmatprep.subr.mxu0 0.0
        %451 = vmatpush1.msra.mxu0 0.0
        %452 = vmatprep.subr.mxu0 0.0
        %453 = vmatpush1.msra.mxu0 0.0
        %454 = vmatprep.subr.mxu0 0.0
        %455 = vmatpush1.msra.mxu0 0.0
        %456 = vmatprep.subr.mxu0 0.0
        %457 = vmatpush1.msra.mxu0 0.0
        %458 = vmatprep.subr.mxu0 0.0
        %459 = vmatpush1.msra.mxu0 0.0
        %460 = vmatprep.subr.mxu0 0.0
        %461 = vmatpush1.msra.mxu0 0.0
        %462 = vmatprep.subr.mxu0 0.0
        %463 = vmatpush1.msra.mxu0 0.0
        %464 = vmatprep.subr.mxu0 0.0
        %465 = vmatpush1.msra.mxu0 0.0
        %466 = vmatprep.subr.mxu0 0.0
        %467 = vmatpush1.msra.mxu0 0.0
        %468 = vmatprep.subr.mxu0 0.0
        %469 = vmatpush1.msra.mxu0 0.0
        %470 = vmatprep.subr.mxu0 0.0
        %471 = vmatpush1.msra.mxu0 0.0
        %472 = vmatprep.subr.mxu0 0.0
        %473 = vmatpush1.msra.mxu0 0.0
        %474 = vmatprep.subr.mxu0 0.0
        %475 = vmatpush1.msra.mxu0 0.0
        %476 = vmatprep.subr.mxu0 0.0
        %477 = vmatpush1.msra.mxu0 0.0
        %478 = vmatprep.subr.mxu0 0.0
        %479 = vmatpush1.msra.mxu0 0.0
        %480 = vmatprep.subr.mxu0 0.0
        %481 = vmatpush1.msra.mxu0 0.0
        %482 = vmatprep.subr.mxu0 0.0
        %483 = vmatpush1.msra.mxu0 0.0
        %484 = vmatprep.subr.mxu0 0.0
        %485 = vmatpush1.msra.mxu0 0.0
        %486 = vmatprep.subr.mxu0 0.0
        %487 = vmatpush1.msra.mxu0 0.0
        %488 = vmatprep.subr.mxu0 0.0
        %489 = vmatpush1.msra.mxu0 0.0
        %490 = vmatprep.subr.mxu0 0.0
        %491 = vmatpush1.msra.mxu0 0.0
        %492 = vmatprep.subr.mxu0 0.0
        %493 = vmatpush1.msra.mxu0 0.0
        %494 = vmatprep.subr.mxu0 0.0
        %495 = vmatpush1.msra.mxu0 0.0
        %496 = vmatprep.subr.mxu0 0.0
        %497 = vmatpush1.msra.mxu0 0.0
        %498 = vmatprep.subr.mxu0 0.0
        %499 = vmatpush1.msra.mxu0 0.0
        %500 = vmatprep.subr.mxu0 0.0
        %501 = vmatpush1.msra.mxu0 0.0
        %502 = vmatprep.subr.mxu0 0.0
        %503 = vmatpush1.msra.mxu0 0.0
        %504 = vmatprep.mubr.f32.mxu0 0.0
        %505 = vmatmul.mubr.f32.gmra.mrb[0].mxu0 %v438
        %v506 = vpop.f32.mrb[0].mxu0
        %v507 = vadd.f32 0.0, %v506
        %v508 = vpop.f32.mrb[0].mxu0
        %509 = vdwg.mxu0
        %v510 = vrcp.pop %v436
        %v511 = vmul.f32 %v507, %v510
        %v512 = vld [vmem:[#allocation5] sm:$0xff]
        %v513 = vld [vmem:[#allocation5 + $0x8] sm:$0xff]
        %v514 = vld [vmem:[#allocation5 + $0x10] sm:$0xff]
        %v515 = vld [vmem:[#allocation5 + $0x18] sm:$0xff]
        %v516 = vld [vmem:[#allocation7] sm:$0xff]
        %v517 = vld [vmem:[#allocation7 + $0x8] sm:$0xff]
        %v518 = vld [vmem:[#allocation7 + $0x10] sm:$0xff]
        %v519 = vld [vmem:[#allocation7 + $0x18] sm:$0xff]
        %v521 = vsel %vm347, %v511, 0
        %523 = vmatprep.subr.mxu0 0.0
        %524 = vmatpush1.msra.mxu0 %v516
        %525 = vmatprep.subr.mxu0 0.0
        %526 = vmatpush1.msra.mxu0 %v517
        %527 = vmatprep.subr.mxu0 0.0
        %528 = vmatpush1.msra.mxu0 %v518
        %529 = vmatprep.subr.mxu0 0.0
        %530 = vmatpush1.msra.mxu0 %v519
        %531 = vmatprep.subr.mxu0 0.0
        %532 = vmatpush1.msra.mxu0 0.0
        %533 = vmatprep.subr.mxu0 0.0
        %534 = vmatpush1.msra.mxu0 0.0
        %535 = vmatprep.subr.mxu0 0.0
        %536 = vmatpush1.msra.mxu0 0.0
        %537 = vmatprep.subr.mxu0 0.0
        %538 = vmatpush1.msra.mxu0 0.0
        %539 = vmatprep.subr.mxu0 0.0
        %540 = vmatpush1.msra.mxu0 0.0
        %541 = vmatprep.subr.mxu0 0.0
        %542 = vmatpush1.msra.mxu0 0.0
        %543 = vmatprep.subr.mxu0 0.0
        %544 = vmatpush1.msra.mxu0 0.0
        %545 = vmatprep.subr.mxu0 0.0
        %546 = vmatpush1.msra.mxu0 0.0
        %547 = vmatprep.subr.mxu0 0.0
        %548 = vmatpush1.msra.mxu0 0.0
        %549 = vmatprep.subr.mxu0 0.0
        %550 = vmatpush1.msra.mxu0 0.0
        %551 = vmatprep.subr.mxu0 0.0
        %552 = vmatpush1.msra.mxu0 0.0
        %553 = vmatprep.subr.mxu0 0.0
        %554 = vmatpush1.msra.mxu0 0.0
        %555 = vmatprep.subr.mxu0 0.0
        %556 = vmatpush1.msra.mxu0 0.0
        %557 = vmatprep.subr.mxu0 0.0
        %558 = vmatpush1.msra.mxu0 0.0
        %559 = vmatprep.subr.mxu0 0.0
        %560 = vmatpush1.msra.mxu0 0.0
        %561 = vmatprep.subr.mxu0 0.0
        %562 = vmatpush1.msra.mxu0 0.0
        %563 = vmatprep.subr.mxu0 0.0
        %564 = vmatpush1.msra.mxu0 0.0
        %565 = vmatprep.subr.mxu0 0.0
        %566 = vmatpush1.msra.mxu0 0.0
        %567 = vmatprep.subr.mxu0 0.0
        %568 = vmatpush1.msra.mxu0 0.0
        %569 = vmatprep.subr.mxu0 0.0
        %570 = vmatpush1.msra.mxu0 0.0
        %571 = vmatprep.subr.mxu0 0.0
        %572 = vmatpush1.msra.mxu0 0.0
        %573 = vmatprep.subr.mxu0 0.0
        %574 = vmatpush1.msra.mxu0 0.0
        %575 = vmatprep.subr.mxu0 0.0
        %576 = vmatpush1.msra.mxu0 0.0
        %577 = vmatprep.subr.mxu0 0.0
        %578 = vmatpush1.msra.mxu0 0.0
        %579 = vmatprep.subr.mxu0 0.0
        %580 = vmatpush1.msra.mxu0 0.0
        %581 = vmatprep.subr.mxu0 0.0
        %582 = vmatpush1.msra.mxu0 0.0
        %583 = vmatprep.subr.mxu0 0.0
        %584 = vmatpush1.msra.mxu0 0.0
        %585 = vmatprep.subr.mxu0 0.0
        %586 = vmatpush1.msra.mxu0 0.0
        %587 = vmatprep.mubr.f32.mxu0 0.0
        %588 = vmatmul.mubr.f32.gmra.mrb[0].mxu0 %v521
        %v589 = vpop.f32.mrb[0].mxu0
        %v590 = vadd.f32 0.0, %v589
        %v591 = vpop.f32.mrb[0].mxu0
        %592 = vdwg.mxu0
        %v594 = vsel %vm347, %v331, 0
        %596 = vmatprep.subr.mxu0 0.0
        %597 = vmatpush1.msra.mxu0 %v512
        %598 = vmatprep.subr.mxu0 0.0
        %599 = vmatpush1.msra.mxu0 %v513
        %600 = vmatprep.subr.mxu0 0.0
        %601 = vmatpush1.msra.mxu0 %v514
        %602 = vmatprep.subr.mxu0 0.0
        %603 = vmatpush1.msra.mxu0 %v515
        %604 = vmatprep.subr.mxu0 0.0
        %605 = vmatpush1.msra.mxu0 0.0
        %606 = vmatprep.subr.mxu0 0.0
        %607 = vmatpush1.msra.mxu0 0.0
        %608 = vmatprep.subr.mxu0 0.0
        %609 = vmatpush1.msra.mxu0 0.0
        %610 = vmatprep.subr.mxu0 0.0
        %611 = vmatpush1.msra.mxu0 0.0
        %612 = vmatprep.subr.mxu0 0.0
        %613 = vmatpush1.msra.mxu0 0.0
        %614 = vmatprep.subr.mxu0 0.0
        %615 = vmatpush1.msra.mxu0 0.0
        %616 = vmatprep.subr.mxu0 0.0
        %617 = vmatpush1.msra.mxu0 0.0
        %618 = vmatprep.subr.mxu0 0.0
        %619 = vmatpush1.msra.mxu0 0.0
        %620 = vmatprep.subr.mxu0 0.0
        %621 = vmatpush1.msra.mxu0 0.0
        %622 = vmatprep.subr.mxu0 0.0
        %623 = vmatpush1.msra.mxu0 0.0
        %624 = vmatprep.subr.mxu0 0.0
        %625 = vmatpush1.msra.mxu0 0.0
        %626 = vmatprep.subr.mxu0 0.0
        %627 = vmatpush1.msra.mxu0 0.0
        %628 = vmatprep.subr.mxu0 0.0
        %629 = vmatpush1.msra.mxu0 0.0
        %630 = vmatprep.subr.mxu0 0.0
        %631 = vmatpush1.msra.mxu0 0.0
        %632 = vmatprep.subr.mxu0 0.0
        %633 = vmatpush1.msra.mxu0 0.0
        %634 = vmatprep.subr.mxu0 0.0
        %635 = vmatpush1.msra.mxu0 0.0
        %636 = vmatprep.subr.mxu0 0.0
        %637 = vmatpush1.msra.mxu0 0.0
        %638 = vmatprep.subr.mxu0 0.0
        %639 = vmatpush1.msra.mxu0 0.0
        %640 = vmatprep.subr.mxu0 0.0
        %641 = vmatpush1.msra.mxu0 0.0
        %642 = vmatprep.subr.mxu0 0.0
        %643 = vmatpush1.msra.mxu0 0.0
        %644 = vmatprep.subr.mxu0 0.0
        %645 = vmatpush1.msra.mxu0 0.0
        %646 = vmatprep.subr.mxu0 0.0
        %647 = vmatpush1.msra.mxu0 0.0
        %648 = vmatprep.subr.mxu0 0.0
        %649 = vmatpush1.msra.mxu0 0.0
        %650 = vmatprep.subr.mxu0 0.0
        %651 = vmatpush1.msra.mxu0 0.0
        %652 = vmatprep.subr.mxu0 0.0
        %653 = vmatpush1.msra.mxu0 0.0
        %654 = vmatprep.subr.mxu0 0.0
        %655 = vmatpush1.msra.mxu0 0.0
        %656 = vmatprep.subr.mxu0 0.0
        %657 = vmatpush1.msra.mxu0 0.0
        %658 = vmatprep.subr.mxu0 0.0
        %659 = vmatpush1.msra.mxu0 0.0
        %660 = vmatprep.mubr.f32.mxu0 0.0
        %661 = vmatmul.mubr.f32.gmra.mrb[0].mxu0 %v594
        %v662 = vpop.f32.mrb[0].mxu0
        %v663 = vadd.f32 %v590, %v662
        %v664 = vpop.f32.mrb[0].mxu0
        %665 = vdwg.mxu0
        %v666 = vld [vmem:[%s5] sm:$0x1]
        %v668 = vlaneseq
        %v669 = vshrl.u32 %v668, 7
        %v670 = vsub.s32 0, %v669
        %v671 = vrot.slane %v666, %v670
        %v673 = vadd.f32 %v663, %v671
        %v674 = vtanh.pop %v673
        %v675 = vxor.u32 %v673, 2147483648
        %v676 = vmul.f32 %v675, 1.442695
        %v677 = vpow.pop %v676
        %v678 = vadd.f32 %v677, 1.0
        %v679 = vrcp.pop %v678
        %v680 = vmul.f32 1.0, %v679
        %681 = vrot.lane.b32.xlu0 %v331, 32
        %v682 = vpop.permute.xlu0 %681
        %v684 = vmul.f32 %v680, %v682
        %686 = vrot.lane.b32.xlu0 %v674, 64
        %v687 = vpop.permute.xlu0 %686
        %v689 = vmul.f32 %v680, %v687
        %691 = vrot.lane.b32.xlu0 %v689, 96
        %v692 = vpop.permute.xlu0 %691
        %v694 = vadd.f32 %v684, %v692
        %696 = vrot.lane.b32.xlu0 %v694, 96
        %v697 = vpop.permute.xlu0 %696
        %699 = vst.msk [vmem:[%s323] sm:$0xff] %vm347, %v697
        %s700 = sand.u32 %s182, 1
        %s701 = scalar_lea.sflag [#allocation4], %s700
        %s702 = sand.u32 %s182, 1
        %s703 = smul.addr %s702, 8
        %s704 = scalar_lea.vmem [#allocation8], %s703
        // Predicated region
        $region57: #{tpu_custom_call.1} parent=43 // pred_check
          %p705 = pneg %p192
        $region58: #{tpu_custom_call.1} parent=43 // pred_check_branch
          %707 = sbr.rel (%p705) target = $region60
        $region59: #{tpu_custom_call.1} parent=43 // pred_region
          %s709 = ssub.s32 128, 128
          %710 = vsyncadd %s701, %s709
          %s711 = smul.addr %s28, 2
          %s712 = sadd.s32 %s29, %s711
          %s713 = smul.addr %s712, 128
          %s714 = scalar_lea.hbm %s6, %s713
          %s716 = sshll.u32 %s704, 4
          %s717 = int_to_ptr.vmem [resolvable:$true] %s716
          %719 = dma.vmem_to_hbm [thread:$0]  %s717, 128, %s714, %s701
        $region60: #{tpu_custom_call.1} parent=43 // pred_fallthru
          _
      $region44: #{tpu_custom_call.1} parent=5 // pred_fallthru
        _
      %p720 = scmp.le.s32.totalorder 2, %s19
      // Predicated region
      $region61: #{tpu_custom_call.1} parent=5 // pred_check
        %p721 = pneg %p720
      $region62: #{tpu_custom_call.1} parent=5 // pred_check_branch
        %723 = sbr.rel (%p721) target = $region64
      $region63: #{tpu_custom_call.1} parent=5 // pred_region
        %s724 = ssub.s32 %s19, 2
        // Predicated region
        $region65: #{tpu_custom_call.1} parent=63 // pred_check
          %p725 = pneg %p198
        $region66: #{tpu_custom_call.1} parent=63 // pred_check_branch
          %727 = sbr.rel (%p725) target = $region68
        $region67: #{tpu_custom_call.1} parent=63 // pred_region
          %s728 = sand.u32 %s183, 1
          %s729 = scalar_lea.sflag [#allocation4], %s728
          %s730 = sand.u32 %s183, 1
          %s731 = smul.addr %s730, 8
          %s732 = scalar_lea.vmem [#allocation8], %s731
          %733 = dma.done %s729, 128
        $region68: #{tpu_custom_call.1} parent=63 // pred_fallthru
          _
      $region64: #{tpu_custom_call.1} parent=5 // pred_fallthru
        _
    $region6: #{tpu_custom_call.1} parent=1 // loop_footer
      %s23 = sadd.s32 1, %s19
    $region7: #{tpu_custom_call.1} parent=1 // loop_footer_branch
      %18 = sbr.rel target = $region3
    $region8: #{tpu_custom_call.1} parent=1 // loop_exit
      _
    %734 = vsyncpa [#allocation3], 1
    %s735 = scalar_lea.sflag [#allocation3], 1
    %736 = vsyncpa %s735, 1
    %737 = vsyncpa [#allocation6], 1
    %738 = vsyncpa [#allocation4], 1
    %s739 = scalar_lea.sflag [#allocation4], 1
    %740 = vsyncpa %s739, 1

</llo_original>
